<compile_context>
chip_gen: v6e
topology: v6e:2x2x1
jax: 0.10.0
libtpu: 0.0.40
codegen_flags: <defaults>
</compile_context>

<pallas_src>
import functools

import jax
import jax.numpy as jnp
from jax import lax
from jax.experimental import pallas as pl
from jax.experimental.pallas import tpu as pltpu

SOFTSHRINK_LAMBDA = 0.5  # nn.Softshrink() default


def _round_up(x, m):
    return ((x + m - 1) // m) * m


def _pick_tile(dim, pref, step):
    """Largest multiple of `step` <= min(pref, dim) that divides `dim`.

    `dim` must already be a multiple of `step`, so step always divides and the
    loop terminates.  This fixes the previous bug where tn did not divide pd
    (e.g. d=384 -> columns 256..383 never computed).
    """
    t = max(step, (min(pref, dim) // step) * step)
    while dim % t:
        t -= step
    return t


def _vmem_capacity_bytes():
    try:
        return int(pltpu.get_tpu_info().vmem_capacity_bytes)
    except Exception:
        return 64 * 1024 * 1024  # conservative: v7x per-TensorCore VMEM


def _softshrink(x, lam):
    lam = jnp.asarray(lam, x.dtype)
    return jnp.where(x > lam, x - lam,
                     jnp.where(x < -lam, x + lam, jnp.zeros_like(x)))


def _pad2(a, rows, cols):
    r, c = a.shape
    if r == rows and c == cols:
        return a
    return jnp.pad(a, ((0, rows - r), (0, cols - c)))


# ---------------------------------------------------------------------------
# Single layer: tiled matmul + bias + softshrink (P1 + P3)
# ---------------------------------------------------------------------------
def _alista_tiled_kernel(z_ref, w_ref, b_ref, o_ref, acc_ref, *, lam, mxu_dtype):
    k = pl.program_id(2)

    @pl.when(k == 0)
    def _():
        acc_ref[...] = jnp.zeros_like(acc_ref)

    # MXU: bf16 x bf16 -> f32 accumulate.  The casts are per-tile and hidden
    # under the matmul; W keeps its HBM dtype (no wrapper-side cast pass).
    acc_ref[...] += jnp.dot(z_ref[...].astype(mxu_dtype),
                            w_ref[...].astype(mxu_dtype),
                            preferred_element_type=jnp.float32)

    @pl.when(k == pl.num_programs(2) - 1)
    def _():
        # Bias + softshrink once per output tile, in f32 on the VPU.
        acc = acc_ref[...] + b_ref[...]          # (tm,tn) + (1,tn) broadcast
        o_ref[...] = _softshrink(acc, lam).astype(o_ref.dtype)


def alista_layer(z, W, b, *, lam=SOFTSHRINK_LAMBDA, matmul_dtype=jnp.bfloat16,
                 tm=512, tn=512, tk=1024, out_dtype=None):
    """softshrink(z @ W + b).  z: (batch, D), W: (D, D), b: (D,)."""
    batch, d = z.shape
    assert W.shape == (d, d) and b.shape == (d,)
    out_dtype = z.dtype if out_dtype is None else out_dtype

    # bf16 packs two rows per sublane -> round rows to 16; lanes to 128.
    pb = _round_up(batch, 16)
    pd = _round_up(d, 128)
    tm = _pick_tile(pb, tm, 16)
    tn = _pick_tile(pd, tn, 128)
    tk = _pick_tile(pd, tk, 128)

    zp = _pad2(z, pb, pd)                    # original dtype; cast per tile
    Wp = _pad2(W, pd, pd)                    # no wrapper cast of the DxD weight
    bp = _pad2(b.astype(jnp.float32).reshape(1, d), 1, pd)

    grid = (pb // tm, pd // tn, pd // tk)
    n_row_blocks, n_col_blocks, n_k_blocks = grid

    # Triple-buffer the weight stream when it is the single large exposed HBM
    # stream (tiny batch, several k-steps) to hide HBM latency jitter.
    w_buffers = 3 if (n_row_blocks == 1 and n_k_blocks >= 3) else 2
    if w_buffers == 3:
        w_spec = pl.BlockSpec((tk, tn), lambda i, j, k: (k, j),
                              pipeline_mode=pl.Buffered(3))
    else:
        w_spec = pl.BlockSpec((tk, tn), lambda i, j, k: (k, j))

    zi = jnp.dtype(zp.dtype).itemsize
    wi = jnp.dtype(Wp.dtype).itemsize
    oi = jnp.dtype(out_dtype).itemsize
    vmem_need = (2 * tm * tk * zi + w_buffers * tk * tn * wi
                 + 2 * tn * 4 + 2 * tm * tn * oi + tm * tn * 4)
    vmem_cap = _vmem_capacity_bytes()
    vmem_limit = int(min(0.9 * vmem_cap,
                         max(2 * vmem_need, 32 * 1024 * 1024)))

    # W is re-streamed once per row-block of z; z once per column-block.
    bytes_accessed = (n_col_blocks * pb * pd * zi
                      + n_row_blocks * pd * pd * wi
                      + pd * 4
                      + pb * pd * oi)
    cost = pl.CostEstimate(flops=2 * pb * pd * pd, transcendentals=0,
                           bytes_accessed=int(bytes_accessed))

    out = pl.pallas_call(
        functools.partial(_alista_tiled_kernel, lam=float(lam),
                          mxu_dtype=matmul_dtype),
        out_shape=jax.ShapeDtypeStruct((pb, pd), out_dtype),
        grid_spec=pltpu.PrefetchScalarGridSpec(
            num_scalar_prefetch=0,
            grid=grid,
            in_specs=[
                pl.BlockSpec((tm, tk), lambda i, j, k: (i, k)),  # z tile
                w_spec,                                          # W tile
                pl.BlockSpec((1, tn), lambda i, j, k: (0, j)),   # bias lanes
            ],
            out_specs=pl.BlockSpec((tm, tn), lambda i, j, k: (i, j)),
            scratch_shapes=[pltpu.VMEM((tm, tn), jnp.float32)],
        ),
        compiler_params=pltpu.CompilerParams(
            dimension_semantics=("parallel", "parallel", "arbitrary"),
            vmem_limit_bytes=vmem_limit),
        cost_estimate=cost,
    )(zp, Wp, bp)

    return out[:batch, :d]


# ---------------------------------------------------------------------------
# Fused T-iteration path: W and b stay VMEM-resident for all iterations
# ---------------------------------------------------------------------------
def _alista_fused_kernel(z_ref, w_ref, b_ref, o_ref, *, num_iters, lam, mxu_dtype):
    w = w_ref[...].astype(mxu_dtype)          # loaded once, VMEM-resident
    b = b_ref[...]

    def body(_, zc):
        acc = jnp.dot(zc.astype(mxu_dtype), w,
                      preferred_element_type=jnp.float32) + b
        return _softshrink(acc, lam)          # carry stays f32

    z0 = z_ref[...].astype(jnp.float32)
    # Iterations are serially dependent: unrolling buys no cross-iteration
    # overlap, so only unroll small trip counts (avoids code-size blowup).
    zT = lax.fori_loop(0, num_iters, body, z0, unroll=(num_iters <= 4))
    o_ref[...] = zT.astype(o_ref.dtype)


def alista_layer_fused(z, W, b, num_iters, *, lam=SOFTSHRINK_LAMBDA,
                       matmul_dtype=jnp.bfloat16, row_block=512):
    """Apply the ALISTA layer num_iters times with W/b loaded from HBM once."""
    batch, d = z.shape
    assert W.shape == (d, d) and b.shape == (d,)
    out_dtype = z.dtype
    num_iters = int(num_iters)
    if num_iters <= 0:
        return z

    pb = _round_up(batch, 16)
    pd = _round_up(d, 128)
    tmb = _pick_tile(pb, row_block, 16)

    wi = jnp.dtype(W.dtype).itemsize
    vmem_cap = _vmem_capacity_bytes()
    # Generation-aware gate: resident W (double-buffered), z/out blocks and
    # the f32 loop carry must fit per-core VMEM (v5e/v6e 128 MiB, v7x 64 MiB).
    vmem_need = (2 * pd * pd * wi
                 + 2 * tmb * pd * jnp.dtype(z.dtype).itemsize
                 + 2 * tmb * pd * 4          # f32 output blocks
                 + 2 * pd * 4                # bias
                 + 2 * tmb * pd * 4)         # loop carry headroom
    if vmem_need > int(0.8 * vmem_cap):
        # W does not fit in VMEM on this generation: loop the tiled kernel.
        out = z
        for _ in range(num_iters):
            out = alista_layer(out, W, b, lam=lam, matmul_dtype=matmul_dtype)
        return out

    zp = _pad2(z, pb, pd).astype(jnp.float32)   # f32 carry between iterations
    Wp = _pad2(W, pd, pd)                       # keep HBM dtype; cast in kernel
    bp = _pad2(b.astype(jnp.float32).reshape(1, d), 1, pd)

    n_row_blocks = pb // tmb
    vmem_limit = int(min(0.9 * vmem_cap,
                         max(vmem_need + 16 * 1024 * 1024, 32 * 1024 * 1024)))

    cost = pl.CostEstimate(
        flops=2 * pb * pd * pd * num_iters, transcendentals=0,
        bytes_accessed=int(min(n_row_blocks, 2) * pd * pd * wi
                           + pb * pd * 4 + pd * 4 + pb * pd * 4))

    out = pl.pallas_call(
        functools.partial(_alista_fused_kernel, num_iters=num_iters,
                          lam=float(lam), mxu_dtype=matmul_dtype),
        out_shape=jax.ShapeDtypeStruct((pb, pd), jnp.float32),
        grid_spec=pltpu.PrefetchScalarGridSpec(
            num_scalar_prefetch=0,
            grid=(n_row_blocks,),
            in_specs=[
                pl.BlockSpec((tmb, pd), lambda i: (i, 0)),   # z row block
                pl.BlockSpec((pd, pd), lambda i: (0, 0)),    # constant block ->
                pl.BlockSpec((1, pd), lambda i: (0, 0)),     # stays resident
            ],
            out_specs=pl.BlockSpec((tmb, pd), lambda i: (i, 0)),
        ),
        compiler_params=pltpu.CompilerParams(
            # row blocks can be split across both v7x TensorCores
            dimension_semantics=("parallel",),
            vmem_limit_bytes=vmem_limit),
        cost_estimate=cost,
        input_output_aliases={0: 0},              # reuse z's padded buffer
    )(zp, Wp, bp)

    return out[:batch, :d].astype(out_dtype)


if __name__ == "__main__":
    key = jax.random.PRNGKey(0)
    k1, k2, k3 = jax.random.split(key, 3)

    batch = 8
    dict_size = 32  # module's dict_size

    W = jax.random.normal(k1, (dict_size, dict_size), dtype=jnp.float32)
    b = jax.random.normal(k2, (dict_size,), dtype=jnp.float32)
    z = jax.random.normal(k3, (batch, dict_size), dtype=jnp.float32)

    lam = SOFTSHRINK_LAMBDA

    def ref_layer(zz, cast=None):
        zc = zz.astype(cast) if cast is not None else zz
        wc = W.astype(cast) if cast is not None else W
        acc = jnp.dot(zc, wc, preferred_element_type=jnp.float32) + b
        return jnp.where(acc > lam, acc - lam,
                         jnp.where(acc < -lam, acc + lam, 0.0))

    # --- single layer (== module.forward) ---
    out = jax.block_until_ready(alista_layer(z, W, b))
    assert out.shape == z.shape and out.dtype == z.dtype

    ref_bf16 = ref_layer(z, cast=jnp.bfloat16)  # same math the kernel performs
    ref_f32 = ref_layer(z)                      # exact f32 module semantics
    assert jnp.allclose(out, ref_bf16, atol=2e-3, rtol=2e-3), "kernel vs bf16 ref"
    # bf16 MXU inputs (f32 accumulate) -> relaxed tolerance vs pure-f32 reference.
    assert jnp.allclose(out, ref_f32, atol=2e-1, rtol=5e-2), "kernel vs f32 ref"

    # --- fused multi-iteration path (W/b resident in VMEM across iterations) ---
    T = 3
    out_fused = jax.block_until_ready(alista_layer_fused(z, W, b, T))
    ref_it = z
    for _ in range(T):
        ref_it = ref_layer(ref_it, cast=jnp.bfloat16)
    assert jnp.allclose(out_fused, ref_it, atol=5e-2, rtol=5e-2), "fused vs ref"

    print("KERNEL_OK")
</pallas_src>

<mosaic_0001>
module attributes {stable_mosaic.version = 11 : i64} {
  func.func @_alista_tiled_kernel(%arg0: i32, %arg1: i32, %arg2: i32, %arg3: memref<16x128xf32, #tpu.memory_space<vmem>>, %arg4: memref<128x128xf32, #tpu.memory_space<vmem>>, %arg5: memref<1x128xf32, #tpu.memory_space<vmem>>, %arg6: memref<16x128xf32, #tpu.memory_space<vmem>>, %arg7: memref<16x128xf32, #tpu.memory_space<vmem>>) attributes {dimension_semantics = [#tpu.dimension_semantics<parallel>, #tpu.dimension_semantics<parallel>, #tpu.dimension_semantics<arbitrary>], iteration_bounds = array<i64: 1, 1, 1>, scalar_prefetch = 0 : i64, scratch_operands = 1 : i64, tpu.core_type = #tpu.core_type<tc>, window_params = [{transform_indices = @transform_0, window_bounds = array<i64: 16, 128>}, {transform_indices = @transform_1, window_bounds = array<i64: 128, 128>}, {transform_indices = @transform_2, window_bounds = array<i64: 1, 128>}, {transform_indices = @transform_3, window_bounds = array<i64: 16, 128>}]} {
    %c0_i32 = arith.constant 0 : i32
    %0 = arith.cmpi eq, %arg2, %c0_i32 : i32
    %1 = arith.extui %0 : i1 to i32
    %c0_i32_0 = arith.constant 0 : i32
    %2 = arith.cmpi ne, %1, %c0_i32_0 : i32
    scf.if %2 {
      %cst_10 = arith.constant 0.000000e+00 : f32
      %14 = vector.broadcast %cst_10 : f32 to vector<16x128xf32>
      %c0_11 = arith.constant 0 : index
      %c0_12 = arith.constant 0 : index
      %15 = vector.load %arg7[%c0_11, %c0_12] : memref<16x128xf32, #tpu.memory_space<vmem>>, vector<16x128xf32>
      tpu.vector_store %arg7[%c0_11, %c0_12], %14 {strides = array<i32>} : memref<16x128xf32, #tpu.memory_space<vmem>>, vector<16x128xf32>,
    } else {
    }
    %c0 = arith.constant 0 : index
    %c0_1 = arith.constant 0 : index
    %3 = vector.load %arg7[%c0, %c0_1] : memref<16x128xf32, #tpu.memory_space<vmem>>, vector<16x128xf32>
    %c0_2 = arith.constant 0 : index
    %c0_3 = arith.constant 0 : index
    %4 = vector.load %arg3[%c0_2, %c0_3] : memref<16x128xf32, #tpu.memory_space<vmem>>, vector<16x128xf32>
    %5 = arith.truncf %4 : vector<16x128xf32> to vector<16x128xbf16>
    %c0_4 = arith.constant 0 : index
    %c0_5 = arith.constant 0 : index
    %6 = vector.load %arg4[%c0_4, %c0_5] : memref<128x128xf32, #tpu.memory_space<vmem>>, vector<128x128xf32>
    %7 = arith.truncf %6 : vector<128x128xf32> to vector<128x128xbf16>
    %cst = arith.constant dense<0.000000e+00> : vector<16x128xf32>
    %8 = tpu.matmul %5, %7, %cst {dimension_numbers = #tpu.dot_dimension_numbers<[1], [0], [0], [1], [0, 0, 1, 1], [], []>} : vector<16x128xbf16>, vector<128x128xbf16>, vector<16x128xf32> -> vector<16x128xf32>
    %9 = arith.addf %3, %8 : vector<16x128xf32>
    %c0_6 = arith.constant 0 : index
    %c0_7 = arith.constant 0 : index
    %10 = vector.load %arg7[%c0_6, %c0_7] : memref<16x128xf32, #tpu.memory_space<vmem>>, vector<16x128xf32>
    tpu.vector_store %arg7[%c0_6, %c0_7], %9 {strides = array<i32>} : memref<16x128xf32, #tpu.memory_space<vmem>>, vector<16x128xf32>,
    %c0_i32_8 = arith.constant 0 : i32
    %11 = arith.cmpi eq, %arg2, %c0_i32_8 : i32
    %12 = arith.extui %11 : i1 to i32
    %c0_i32_9 = arith.constant 0 : i32
    %13 = arith.cmpi ne, %12, %c0_i32_9 : i32
    scf.if %13 {
      %c0_10 = arith.constant 0 : index
      %c0_11 = arith.constant 0 : index
      %14 = vector.load %arg7[%c0_10, %c0_11] : memref<16x128xf32, #tpu.memory_space<vmem>>, vector<16x128xf32>
      %c0_12 = arith.constant 0 : index
      %c0_13 = arith.constant 0 : index
      %15 = vector.load %arg5[%c0_12, %c0_13] : memref<1x128xf32, #tpu.memory_space<vmem>>, vector<1x128xf32>
      %16 = vector.broadcast %15 : vector<1x128xf32> to vector<16x128xf32>
      %17 = arith.addf %14, %16 : vector<16x128xf32>
      %cst_14 = arith.constant 5.000000e-01 : f32
      %18 = vector.broadcast %cst_14 : f32 to vector<16x128xf32>
      %19 = arith.cmpf ogt, %17, %18 : vector<16x128xf32>
      %cst_15 = arith.constant 5.000000e-01 : f32
      %20 = vector.broadcast %cst_15 : f32 to vector<16x128xf32>
      %21 = arith.subf %17, %20 : vector<16x128xf32>
      %cst_16 = arith.constant 0.000000e+00 : f32
      %cst_17 = arith.constant 5.000000e-01 : f32
      %22 = arith.subf %cst_16, %cst_17 : f32
      %23 = vector.broadcast %22 : f32 to vector<16x128xf32>
      %24 = arith.cmpf olt, %17, %23 : vector<16x128xf32>
      %cst_18 = arith.constant 5.000000e-01 : f32
      %25 = vector.broadcast %cst_18 : f32 to vector<16x128xf32>
      %26 = arith.addf %17, %25 : vector<16x128xf32>
      %cst_19 = arith.constant 0.000000e+00 : f32
      %27 = vector.broadcast %cst_19 : f32 to vector<16x128xf32>
      %28 = arith.select %24, %26, %27 : vector<16x128xi1>, vector<16x128xf32>
      %29 = arith.select %19, %21, %28 : vector<16x128xi1>, vector<16x128xf32>
      %c0_20 = arith.constant 0 : index
      %c0_21 = arith.constant 0 : index
      %30 = vector.load %arg6[%c0_20, %c0_21] : memref<16x128xf32, #tpu.memory_space<vmem>>, vector<16x128xf32>
      tpu.vector_store %arg6[%c0_20, %c0_21], %29 {strides = array<i32>} : memref<16x128xf32, #tpu.memory_space<vmem>>, vector<16x128xf32>,
    } else {
    }
    return
  }
  func.func @transform_0(%arg0: i32, %arg1: i32, %arg2: i32) -> (i32, i32) {
    %c0_i32 = arith.constant 0 : i32
    return %arg0, %arg2 : i32, i32
  }
  func.func @transform_1(%arg0: i32, %arg1: i32, %arg2: i32) -> (i32, i32) {
    %c0_i32 = arith.constant 0 : i32
    return %arg2, %arg1 : i32, i32
  }
  func.func @transform_2(%arg0: i32, %arg1: i32, %arg2: i32) -> (i32, i32) {
    %c0_i32 = arith.constant 0 : i32
    %c0_i32_0 = arith.constant 0 : i32
    return %c0_i32, %arg1 : i32, i32
  }
  func.func @transform_3(%arg0: i32, %arg1: i32, %arg2: i32) -> (i32, i32) {
    %c0_i32 = arith.constant 0 : i32
    return %arg0, %arg1 : i32, i32
  }
}

</mosaic_0001>

<llo_original>
// kernel: tpu_custom_call.1
$region0: #{tpu_custom_call.1}
  #allocation0 [shape = 'u32[]', space=smem, size = 0x4, offset = 0x4, fixed_abs, tag = 'smem constant byte address 0x4 - core index']
  #allocation1 [shape = 'u32[144,128]{1,0:T(1,128)}', space=vmem, size = 0x12000, scoped, tag = 'internal scratch']
  #allocation2 [shape = 'f32[16,128]{1,0:T(8,128)}', space=vmem, size = 0x2000, scoped, tag = 'scratch operand']
  %s0 = inlined_call_operand.hbm [shape: f32[16,128], index: 0, kind: input, shape index: {}]
  %s1 = inlined_call_operand.hbm [shape: f32[128,128], index: 1, kind: input, shape index: {}]
  %s2 = inlined_call_operand.vmem [shape: f32[1,128], index: 2, kind: input, shape index: {}]
  %s3 = inlined_call_operand.hbm [shape: f32[16,128], index: 3, kind: output, shape index: {}]
  %s4 = sld [smem:[#allocation0]]
  $region38: #{tpu_custom_call.1} parent=0
    _
  %s6 = ssub.s32 1, %s4
  %s7 = scalar_select 0, %s6, %s4
  $region1: #{tpu_custom_call.1} parent=0
    #allocation3 [shape = 'u8[8192]{0}', space=vmem, size = 0x2000, scoped, tag = 'input window, operand 0, single buffered']
    #allocation4 [shape = 's32[1]{0}', space=sflag, size = 0x4, scoped, tag = 'scoped memory for tpu_custom_call.1']
    #allocation5 [shape = 's32[1]{0}', space=sflag, size = 0x4, scoped, tag = 'scoped memory for tpu_custom_call.1']
    #allocation6 [shape = 'u8[65536]{0}', space=vmem, size = 0x10000, scoped, tag = 'input window, operand 1, single buffered']
    #allocation7 [shape = 's32[1]{0}', space=sflag, size = 0x4, scoped, tag = 'scoped memory for tpu_custom_call.1']
    #allocation8 [shape = 'u8[8192]{0}', space=vmem, size = 0x2000, scoped, tag = 'output window, operand 0, single buffered']
    %8 = vsyncpa [#allocation4], 0
    %9 = vsyncpa [#allocation7], 0
    %10 = vsyncpa [#allocation5], 0
    // Predicated region
    $region2: #{tpu_custom_call.1} parent=1 // pred_check
      _
    $region3: #{tpu_custom_call.1} parent=1 // pred_check_branch
      %12 = sbr.rel (0) target = $region5
    $region4: #{tpu_custom_call.1} parent=1 // pred_region
      %s14 = ssub.s32 256, 256
      %15 = vsyncadd [#allocation4], %s14
      %s16 = sshll.u32 [#allocation3], 4
      %s17 = int_to_ptr.vmem [resolvable:$true] %s16
      %22 = dma.hbm_to_vmem [thread:$0]  %s0, 256, %s17, [#allocation4], 128, 128, 8
    $region5: #{tpu_custom_call.1} parent=1 // pred_fallthru
      _
    // Predicated region
    $region6: #{tpu_custom_call.1} parent=1 // pred_check
      _
    $region7: #{tpu_custom_call.1} parent=1 // pred_check_branch
      %24 = sbr.rel (0) target = $region9
    $region8: #{tpu_custom_call.1} parent=1 // pred_region
      %s26 = ssub.s32 2048, 2048
      %27 = vsyncadd [#allocation7], %s26
      %s28 = sshll.u32 [#allocation6], 4
      %s29 = int_to_ptr.vmem [resolvable:$true] %s28
      %34 = dma.hbm_to_vmem [thread:$0]  %s1, 2048, %s29, [#allocation7], 128, 128, 8
    $region9: #{tpu_custom_call.1} parent=1 // pred_fallthru
      _
    // Predicated region
    $region10: #{tpu_custom_call.1} parent=1 // pred_check
      _
    $region11: #{tpu_custom_call.1} parent=1 // pred_check_branch
      %36 = sbr.rel (0) target = $region13
    $region12: #{tpu_custom_call.1} parent=1 // pred_region
      _
    $region13: #{tpu_custom_call.1} parent=1 // pred_fallthru
      _
    // Predicated region
    $region14: #{tpu_custom_call.1} parent=1 // pred_check
      _
    $region15: #{tpu_custom_call.1} parent=1 // pred_check_branch
      %38 = sbr.rel (0) target = $region17
    $region16: #{tpu_custom_call.1} parent=1 // pred_region
      %39 = dma.done [#allocation4], 256
    $region17: #{tpu_custom_call.1} parent=1 // pred_fallthru
      _
    // Predicated region
    $region18: #{tpu_custom_call.1} parent=1 // pred_check
      _
    $region19: #{tpu_custom_call.1} parent=1 // pred_check_branch
      %41 = sbr.rel (0) target = $region21
    $region20: #{tpu_custom_call.1} parent=1 // pred_region
      %42 = dma.done [#allocation7], 2048
    $region21: #{tpu_custom_call.1} parent=1 // pred_fallthru
      _
    %p44 = scmp.eq.s32.totalorder 0, 0
    // Predicated region
    $region22: #{tpu_custom_call.1} parent=1 // pred_check
      %p45 = pneg %p44
    $region23: #{tpu_custom_call.1} parent=1 // pred_check_branch
      %47 = sbr.rel (%p45) target = $region25
    $region24: #{tpu_custom_call.1} parent=1 // pred_region
      %48 = vst [vmem:[#allocation2] sm:$0xff] 0.0
      %49 = vst [vmem:[#allocation2 + $0x8] sm:$0xff] 0.0
    $region25: #{tpu_custom_call.1} parent=1 // pred_fallthru
      _
    %v50 = vld [vmem:[#allocation2] sm:$0xff]
    %v51 = vld [vmem:[#allocation2 + $0x8] sm:$0xff]
    %v52 = vld [vmem:[#allocation3] sm:$0xff]
    %v53 = vld [vmem:[#allocation3 + $0x8] sm:$0xff]
    %v54 = vpack.c.bf16 %v53, %v52
    %v55 = vld [vmem:[#allocation6] sm:$0xff]
    %v56 = vld [vmem:[#allocation6 + $0x8] sm:$0xff]
    %v57 = vld [vmem:[#allocation6 + $0x10] sm:$0xff]
    %v58 = vld [vmem:[#allocation6 + $0x18] sm:$0xff]
    %v59 = vld [vmem:[#allocation6 + $0x20] sm:$0xff]
    %v60 = vld [vmem:[#allocation6 + $0x28] sm:$0xff]
    %v61 = vld [vmem:[#allocation6 + $0x30] sm:$0xff]
    %v62 = vld [vmem:[#allocation6 + $0x38] sm:$0xff]
    %v63 = vld [vmem:[#allocation6 + $0x40] sm:$0xff]
    %v64 = vld [vmem:[#allocation6 + $0x48] sm:$0xff]
    %v65 = vld [vmem:[#allocation6 + $0x50] sm:$0xff]
    %v66 = vld [vmem:[#allocation6 + $0x58] sm:$0xff]
    %v67 = vld [vmem:[#allocation6 + $0x60] sm:$0xff]
    %v68 = vld [vmem:[#allocation6 + $0x68] sm:$0xff]
    %v69 = vld [vmem:[#allocation6 + $0x70] sm:$0xff]
    %v70 = vld [vmem:[#allocation6 + $0x78] sm:$0xff]
    %v71 = vpack.c.bf16 %v56, %v55
    %v72 = vpack.c.bf16 %v58, %v57
    %v73 = vpack.c.bf16 %v60, %v59
    %v74 = vpack.c.bf16 %v62, %v61
    %v75 = vpack.c.bf16 %v64, %v63
    %v76 = vpack.c.bf16 %v66, %v65
    %v77 = vpack.c.bf16 %v68, %v67
    %v78 = vpack.c.bf16 %v70, %v69
    %79 = vmatprep.subr.bf16.mxu0 0
    %80 = vmatpush1.bf16.msra.mxu0 %v78
    %81 = vmatprep.subr.bf16.mxu0 0
    %82 = vmatpush1.bf16.msra.mxu0 %v77
    %83 = vmatprep.subr.bf16.mxu0 0
    %84 = vmatpush1.bf16.msra.mxu0 %v76
    %85 = vmatprep.subr.bf16.mxu0 0
    %86 = vmatpush1.bf16.msra.mxu0 %v75
    %87 = vmatprep.subr.bf16.mxu0 0
    %88 = vmatpush1.bf16.msra.mxu0 %v74
    %89 = vmatprep.subr.bf16.mxu0 0
    %90 = vmatpush1.bf16.msra.mxu0 %v73
    %91 = vmatprep.subr.bf16.mxu0 0
    %92 = vmatpush1.bf16.msra.mxu0 %v72
    %93 = vmatprep.subr.bf16.mxu0 0
    %94 = vmatpush1.bf16.msra.mxu0 %v71
    %95 = vmatprep.subr.bf16.mxu0 0
    %96 = vmatpush2.bf16.msra.mxu0 0
    %97 = vmatprep.subr.bf16.mxu0 0
    %98 = vmatpush2.bf16.msra.mxu0 0
    %99 = vmatprep.subr.bf16.mxu0 0
    %100 = vmatpush2.bf16.msra.mxu0 0
    %101 = vmatprep.subr.bf16.mxu0 0
    %102 = vmatpush2.bf16.msra.mxu0 0
    %103 = vmatprep.subr.bf16.mxu0 0
    %104 = vmatpush2.bf16.msra.mxu0 0
    %105 = vmatprep.subr.bf16.mxu0 0
    %106 = vmatpush2.bf16.msra.mxu0 0
    %107 = vmatprep.subr.bf16.mxu0 0
    %108 = vmatpush2.bf16.msra.mxu0 0
    %109 = vmatprep.subr.bf16.mxu0 0
    %110 = vmatpush2.bf16.msra.mxu0 0
    %111 = vmatprep.mubr.bf16.mxu0 0
    %112 = vmatmul.mubr.bf16.gmra.mxu0 %v54
    %v113 = vpop.f32.mrf.mxu0
    %v114 = vadd.f32 0.0, %v113
    %v115 = vpop.f32.mrf.mxu0
    %v116 = vpop.f32.mrf.mxu0
    %v117 = vadd.f32 0.0, %v116
    %v118 = vpop.f32.mrf.mxu0
    %119 = vdwg.mxu0
    %v120 = vadd.f32 %v50, %v114
    %v121 = vadd.f32 %v51, %v117
    %122 = vst [vmem:[#allocation2] sm:$0xff] %v120
    %123 = vst [vmem:[#allocation2 + $0x8] sm:$0xff] %v121
    // Predicated region
    $region26: #{tpu_custom_call.1} parent=1 // pred_check
      %p124 = pneg %p44
    $region27: #{tpu_custom_call.1} parent=1 // pred_check_branch
      %126 = sbr.rel (%p124) target = $region29
    $region28: #{tpu_custom_call.1} parent=1 // pred_region
      %v127 = vld [vmem:[#allocation2] sm:$0xff]
      %v128 = vld [vmem:[#allocation2 + $0x8] sm:$0xff]
      %v129 = vld [vmem:[%s2] sm:$0x1]
      %v131 = vlaneseq
      %v132 = vshrl.u32 %v131, 7
      %v133 = vsub.s32 0, %v132
      %v134 = vrot.slane %v129, %v133
      %v136 = vadd.f32 %v127, %v134
      %v137 = vadd.f32 %v128, %v134
      %vm138 = vcmp.gt.f32.partialorder %v136, 0.5
      %vm139 = vcmp.gt.f32.partialorder %v137, 0.5
      %v140 = vsub.f32 %v136, 0.5
      %v141 = vsub.f32 %v137, 0.5
      %vm142 = vcmp.lt.f32.partialorder %v136, -0.5
      %vm143 = vcmp.lt.f32.partialorder %v137, -0.5
      %v144 = vadd.f32 %v136, 0.5
      %v145 = vadd.f32 %v137, 0.5
      %v146 = vsel %vm142, %v144, 0.0
      %v147 = vsel %vm143, %v145, 0.0
      %v148 = vsel %vm138, %v140, %v146
      %v149 = vsel %vm139, %v141, %v147
      %150 = vst [vmem:[#allocation8] sm:$0xff] %v148
      %151 = vst [vmem:[#allocation8 + $0x8] sm:$0xff] %v149
    $region29: #{tpu_custom_call.1} parent=1 // pred_fallthru
      _
    // Predicated region
    $region30: #{tpu_custom_call.1} parent=1 // pred_check
      _
    $region31: #{tpu_custom_call.1} parent=1 // pred_check_branch
      %153 = sbr.rel (0) target = $region33
    $region32: #{tpu_custom_call.1} parent=1 // pred_region
      %s155 = ssub.s32 256, 256
      %156 = vsyncadd [#allocation5], %s155
      %s157 = sshll.u32 [#allocation8], 4
      %s158 = int_to_ptr.vmem [resolvable:$true] %s157
      %163 = dma.vmem_to_hbm [thread:$0]  %s158, 256, %s3, [#allocation5], 128, 128, 8
    $region33: #{tpu_custom_call.1} parent=1 // pred_fallthru
      _
    // Predicated region
    $region34: #{tpu_custom_call.1} parent=1 // pred_check
      _
    $region35: #{tpu_custom_call.1} parent=1 // pred_check_branch
      %165 = sbr.rel (0) target = $region37
    $region36: #{tpu_custom_call.1} parent=1 // pred_region
      %166 = dma.done [#allocation5], 256
    $region37: #{tpu_custom_call.1} parent=1 // pred_fallthru
      _
    %167 = vsyncpa [#allocation4], 1
    %168 = vsyncpa [#allocation7], 1
    %169 = vsyncpa [#allocation5], 1

</llo_original>
